<compile_context>
chip_gen: v7x
topology: tpu7x:2x2x1
jax: 0.10.0
libtpu: 0.0.40
codegen_flags: <defaults>
</compile_context>

<pallas_src>
import math
from functools import partial

import jax
import jax.numpy as jnp
from jax import lax
from jax.experimental import pallas as pl
from jax.experimental.pallas import tpu as pltpu


def _round_up(x, m):
    return (x + m - 1) // m * m


def _arcface_kernel(has_tgt_ref, feat_ref, wt_ref, invw_ref, tgt_ref,
                    out_ref, acc_ref, *, margin, scale):
    """One grid step: accumulate a (TM, TN) logits tile over one K slice.

    has_tgt_ref : (nb*nc,) i32 SMEM  tile-has-a-target table (scalar prefetch)
    feat_ref    : (TM, TK) bf16      L2-normalized feature rows (K slice)
    wt_ref      : (TK, TN) bf16      un-normalized weight columns (weights^T slice)
    invw_ref    : (1, TN)  f32       1/max(||w_col||, eps); 0 for padded classes
    tgt_ref     : (TM, 1)  i32       target class per row (-1 for padded rows)
    out_ref     : (TM, TN) f32       logits tile (written at the last K step)
    acc_ref     : (TM, TN) f32       VMEM accumulator scratch
    """
    j = pl.program_id(0)          # C-tile (leading, parallel)
    i = pl.program_id(1)          # B-tile (parallel)
    k = pl.program_id(2)          # K-tile (arbitrary / reduction)
    nc = pl.num_programs(0)
    nk = pl.num_programs(2)

    @pl.when(k == 0)
    def _init():
        acc_ref[...] = jnp.zeros_like(acc_ref)

    # bf16 x bf16 -> f32 on the MXU.
    acc_ref[...] += jnp.dot(feat_ref[...], wt_ref[...],
                            preferred_element_type=jnp.float32)

    @pl.when(k == nk - 1)
    def _finalize():
        # Features are pre-normalized; apply the per-class inverse norm here.
        cos_theta = jnp.clip(acc_ref[...] * invw_ref[...], -1.0, 1.0)
        has_target = has_tgt_ref[i * nc + j] != 0

        @pl.when(jnp.logical_not(has_target))
        def _plain():
            out_ref[...] = cos_theta * jnp.float32(scale)

        @pl.when(has_target)
        def _with_margin():
            tm, tn = out_ref.shape
            classes = j * tn + lax.broadcasted_iota(jnp.int32, (tm, tn), 1)
            onehot = tgt_ref[...] == classes
            # cos(acos(x) + m) = x*cos(m) - sqrt(1 - x^2)*sin(m)   (exact after clip)
            sin_theta = jnp.sqrt(jnp.maximum(1.0 - cos_theta * cos_theta, 0.0))
            margined = (cos_theta * jnp.float32(math.cos(margin))
                        - sin_theta * jnp.float32(math.sin(margin)))
            out_ref[...] = jnp.where(onehot, margined, cos_theta) * jnp.float32(scale)


def prepare_arcface_weights(weights, *, block_c=512, block_k=512):
    """One-time weight preparation (cache the result across forward calls)."""
    C, D = weights.shape
    TN = _round_up(min(block_c, C), 128)
    TK = _round_up(min(block_k, D), 128)
    C_pad = _round_up(C, TN)
    D_pad = _round_up(D, TK)

    w32 = weights.astype(jnp.float32)
    eps = jnp.float32(1e-12)
    inv_w = jnp.zeros((1, C_pad), jnp.float32).at[0, :C].set(
        1.0 / jnp.maximum(jnp.sqrt(jnp.sum(w32 * w32, axis=1)), eps))

    w_pad = jnp.pad(w32, ((0, C_pad - C), (0, D_pad - D)))
    wT = w_pad.T.astype(jnp.bfloat16)                    # (D_pad, C_pad) bf16

    return {"wT": wT, "inv_w": inv_w, "C": C, "D": D, "TN": TN, "TK": TK}


def arcface_forward(features, targets, prepared, *, margin=0.5, scale=20.0,
                    block_b=256):
    """features: (B, D), targets: (B,) int, prepared: prepare_arcface_weights(...)."""
    B, D = features.shape
    assert D == prepared["D"]
    wT, inv_w = prepared["wT"], prepared["inv_w"]
    C, TN, TK = prepared["C"], prepared["TN"], prepared["TK"]
    D_pad, C_pad = wT.shape

    TM = _round_up(min(block_b, B), 8)
    B_pad = _round_up(B, TM)
    nb, nc, nk = B_pad // TM, C_pad // TN, D_pad // TK

    eps = jnp.float32(1e-12)
    f32 = features.astype(jnp.float32)
    f_n = f32 / jnp.maximum(
        jnp.sqrt(jnp.sum(f32 * f32, axis=1, keepdims=True)), eps)
    f = jnp.pad(f_n, ((0, B_pad - B), (0, D_pad - D))).astype(jnp.bfloat16)

    tgt_i32 = targets.astype(jnp.int32)
    tgt = jnp.full((B_pad, 1), -1, dtype=jnp.int32).at[:B, 0].set(tgt_i32)

    # Flat (nb*nc,) table: does tile (i, j) contain any target of B-tile i?
    flat_idx = (jnp.arange(B) // TM) * nc + tgt_i32 // TN
    has_tgt = jnp.zeros((nb * nc,), jnp.int32).at[flat_idx].max(
        jnp.ones((B,), jnp.int32))

    kernel = partial(_arcface_kernel, margin=float(margin), scale=float(scale))

    out = pl.pallas_call(
        kernel,
        out_shape=jax.ShapeDtypeStruct((B_pad, C_pad), jnp.float32),
        grid_spec=pltpu.PrefetchScalarGridSpec(
            num_scalar_prefetch=1,
            grid=(nc, nb, nk),
            in_specs=[
                pl.BlockSpec((TM, TK), lambda j, i, k, ht: (i, k)),   # features
                pl.BlockSpec((TK, TN), lambda j, i, k, ht: (k, j)),   # weights^T
                pl.BlockSpec((1, TN),  lambda j, i, k, ht: (0, j)),   # inv weight norms
                pl.BlockSpec((TM, 1),  lambda j, i, k, ht: (i, 0)),   # targets
            ],
            out_specs=pl.BlockSpec((TM, TN), lambda j, i, k, ht: (i, j)),
            scratch_shapes=[pltpu.VMEM((TM, TN), jnp.float32)],
        ),
        compiler_params=pltpu.CompilerParams(
            dimension_semantics=("parallel", "parallel", "arbitrary")),
    )(has_tgt, f, wT, inv_w, tgt)

    return out[:B, :C]


def _reference(features, weights, targets, margin=0.5, scale=20.0):
    """Pure-JAX f32 mirror of the PyTorch forward (uses arccos/cos directly)."""
    eps = 1e-12
    f_n = features / jnp.maximum(
        jnp.linalg.norm(features, axis=1, keepdims=True), eps)
    w_n = weights / jnp.maximum(
        jnp.linalg.norm(weights, axis=1, keepdims=True), eps)
    cos_theta = jnp.clip(f_n @ w_n.T, -1.0, 1.0)
    arc = jnp.arccos(cos_theta)
    M = jax.nn.one_hot(targets, weights.shape[0], dtype=jnp.float32) * margin
    return jnp.cos(arc + M) * scale


if __name__ == "__main__":
    # Small, deliberately non-aligned shapes so padding and a 2x2x2 (C, B, K) grid
    # (including the K-accumulation path) are all exercised.
    B, IN_FEATURES, OUT_FEATURES = 10, 160, 200
    MARGIN, SCALE = 0.5, 20.0

    key = jax.random.PRNGKey(0)
    k_feat, k_w, k_tgt = jax.random.split(key, 3)

    features = jax.random.normal(k_feat, (B, IN_FEATURES), dtype=jnp.float32)

    # xavier_normal_ init for weights (out_features, in_features)
    xavier_std = math.sqrt(2.0 / (IN_FEATURES + OUT_FEATURES))
    weights = xavier_std * jax.random.normal(
        k_w, (OUT_FEATURES, IN_FEATURES), dtype=jnp.float32)

    targets = jax.random.randint(k_tgt, (B,), 0, OUT_FEATURES, dtype=jnp.int32)

    # Small tiles -> grid (nc, nb, nk) = (2, 2, 2).
    prepared = prepare_arcface_weights(weights, block_c=128, block_k=128)
    logits = arcface_forward(features, targets, prepared,
                             margin=MARGIN, scale=SCALE, block_b=8)
    logits = jax.block_until_ready(logits)

    ref = _reference(features, weights, targets, MARGIN, SCALE)
    assert logits.shape == (B, OUT_FEATURES)
    err = float(jnp.max(jnp.abs(logits - ref)))
    # bf16 MXU operands -> tolerance loosened vs the f32 reference (scale=20).
    assert err < 7.5e-2, f"mismatch vs f32 reference: {err}"

    print("KERNEL_OK")
</pallas_src>

<mosaic_0001>
module attributes {stable_mosaic.version = 11 : i64} {
  func.func @_arcface_kernel(%arg0: i32, %arg1: i32, %arg2: i32, %arg3: memref<4xi32, #tpu.memory_space<smem>>, %arg4: memref<8x128xbf16, #tpu.memory_space<vmem>>, %arg5: memref<128x128xbf16, #tpu.memory_space<vmem>>, %arg6: memref<1x128xf32, #tpu.memory_space<vmem>>, %arg7: memref<8x1xi32, #tpu.memory_space<vmem>>, %arg8: memref<8x128xf32, #tpu.memory_space<vmem>>, %arg9: memref<8x128xf32, #tpu.memory_space<vmem>>) attributes {dimension_semantics = [#tpu.dimension_semantics<parallel>, #tpu.dimension_semantics<parallel>, #tpu.dimension_semantics<arbitrary>], iteration_bounds = array<i64: 2, 2, 2>, scalar_prefetch = 1 : i64, scratch_operands = 1 : i64, tpu.core_type = #tpu.core_type<tc>, window_params = [{transform_indices = @transform_0, window_bounds = array<i64: 8, 128>}, {transform_indices = @transform_1, window_bounds = array<i64: 128, 128>}, {transform_indices = @transform_2, window_bounds = array<i64: 1, 128>}, {transform_indices = @transform_3, window_bounds = array<i64: 8, 1>}, {transform_indices = @transform_4, window_bounds = array<i64: 8, 128>}]} {
    %c0_i32 = arith.constant 0 : i32
    %0 = arith.cmpi eq, %arg2, %c0_i32 : i32
    %1 = arith.extui %0 : i1 to i32
    %c0_i32_0 = arith.constant 0 : i32
    %2 = arith.cmpi ne, %1, %c0_i32_0 : i32
    scf.if %2 {
      %cst_9 = arith.constant 0.000000e+00 : f32
      %12 = vector.broadcast %cst_9 : f32 to vector<8x128xf32>
      %c0_10 = arith.constant 0 : index
      %c0_11 = arith.constant 0 : index
      %13 = vector.load %arg9[%c0_10, %c0_11] : memref<8x128xf32, #tpu.memory_space<vmem>>, vector<8x128xf32>
      tpu.vector_store %arg9[%c0_10, %c0_11], %12 {strides = array<i32>} : memref<8x128xf32, #tpu.memory_space<vmem>>, vector<8x128xf32>,
    } else {
    }
    %c0 = arith.constant 0 : index
    %c0_1 = arith.constant 0 : index
    %3 = vector.load %arg9[%c0, %c0_1] : memref<8x128xf32, #tpu.memory_space<vmem>>, vector<8x128xf32>
    %c0_2 = arith.constant 0 : index
    %c0_3 = arith.constant 0 : index
    %4 = vector.load %arg4[%c0_2, %c0_3] : memref<8x128xbf16, #tpu.memory_space<vmem>>, vector<8x128xbf16>
    %c0_4 = arith.constant 0 : index
    %c0_5 = arith.constant 0 : index
    %5 = vector.load %arg5[%c0_4, %c0_5] : memref<128x128xbf16, #tpu.memory_space<vmem>>, vector<128x128xbf16>
    %cst = arith.constant dense<0.000000e+00> : vector<8x128xf32>
    %6 = tpu.matmul %4, %5, %cst {dimension_numbers = #tpu.dot_dimension_numbers<[1], [0], [0], [1], [0, 0, 1, 1], [], []>} : vector<8x128xbf16>, vector<128x128xbf16>, vector<8x128xf32> -> vector<8x128xf32>
    %7 = arith.addf %3, %6 : vector<8x128xf32>
    %c0_6 = arith.constant 0 : index
    %c0_7 = arith.constant 0 : index
    %8 = vector.load %arg9[%c0_6, %c0_7] : memref<8x128xf32, #tpu.memory_space<vmem>>, vector<8x128xf32>
    tpu.vector_store %arg9[%c0_6, %c0_7], %7 {strides = array<i32>} : memref<8x128xf32, #tpu.memory_space<vmem>>, vector<8x128xf32>,
    %c1_i32 = arith.constant 1 : i32
    %9 = arith.cmpi eq, %arg2, %c1_i32 : i32
    %10 = arith.extui %9 : i1 to i32
    %c0_i32_8 = arith.constant 0 : i32
    %11 = arith.cmpi ne, %10, %c0_i32_8 : i32
    scf.if %11 {
      %c0_9 = arith.constant 0 : index
      %c0_10 = arith.constant 0 : index
      %12 = vector.load %arg9[%c0_9, %c0_10] : memref<8x128xf32, #tpu.memory_space<vmem>>, vector<8x128xf32>
      %c0_11 = arith.constant 0 : index
      %c0_12 = arith.constant 0 : index
      %13 = vector.load %arg6[%c0_11, %c0_12] : memref<1x128xf32, #tpu.memory_space<vmem>>, vector<1x128xf32>
      %14 = vector.broadcast %13 : vector<1x128xf32> to vector<8x128xf32>
      %15 = arith.mulf %12, %14 : vector<8x128xf32>
      %cst_13 = arith.constant -1.000000e+00 : f32
      %cst_14 = arith.constant 1.000000e+00 : f32
      %16 = vector.broadcast %cst_13 : f32 to vector<8x128xf32>
      %17 = arith.maximumf %16, %15 : vector<8x128xf32>
      %18 = vector.broadcast %cst_14 : f32 to vector<8x128xf32>
      %19 = arith.minimumf %18, %17 : vector<8x128xf32>
      %c2_i32 = arith.constant 2 : i32
      %20 = arith.muli %arg1, %c2_i32 : i32
      %21 = arith.addi %20, %arg0 : i32
      %22 = arith.index_cast %21 : i32 to index
      %23 = memref.load %arg3[%22] : memref<4xi32, #tpu.memory_space<smem>>
      %c0_i32_15 = arith.constant 0 : i32
      %24 = arith.cmpi ne, %23, %c0_i32_15 : i32
      %true = arith.constant true
      %25 = arith.xori %24, %true : i1
      %26 = arith.extui %25 : i1 to i32
      %c0_i32_16 = arith.constant 0 : i32
      %27 = arith.cmpi ne, %26, %c0_i32_16 : i32
      scf.if %27 {
        %cst_18 = arith.constant 2.000000e+01 : f32
        %30 = vector.broadcast %cst_18 : f32 to vector<8x128xf32>
        %31 = arith.mulf %19, %30 : vector<8x128xf32>
        %c0_19 = arith.constant 0 : index
        %c0_20 = arith.constant 0 : index
        %32 = vector.load %arg8[%c0_19, %c0_20] : memref<8x128xf32, #tpu.memory_space<vmem>>, vector<8x128xf32>
        tpu.vector_store %arg8[%c0_19, %c0_20], %31 {strides = array<i32>} : memref<8x128xf32, #tpu.memory_space<vmem>>, vector<8x128xf32>,
      } else {
      }
      %28 = arith.extui %24 : i1 to i32
      %c0_i32_17 = arith.constant 0 : i32
      %29 = arith.cmpi ne, %28, %c0_i32_17 : i32
      scf.if %29 {
        %c128_i32 = arith.constant 128 : i32
        %30 = arith.muli %arg0, %c128_i32 : i32
        %31 = tpu.iota {dimensions = array<i32: 1>} : vector<8x128xi32>
        %32 = vector.broadcast %30 : i32 to vector<8x128xi32>
        %33 = arith.addi %32, %31 : vector<8x128xi32>
        %c0_18 = arith.constant 0 : index
        %c0_19 = arith.constant 0 : index
        %34 = vector.load %arg7[%c0_18, %c0_19] : memref<8x1xi32, #tpu.memory_space<vmem>>, vector<8x1xi32>
        %35 = vector.broadcast %34 : vector<8x1xi32> to vector<8x128xi32>
        %36 = arith.cmpi eq, %35, %33 : vector<8x128xi32>
        %37 = arith.mulf %19, %19 : vector<8x128xf32>
        %cst_20 = arith.constant 1.000000e+00 : f32
        %38 = vector.broadcast %cst_20 : f32 to vector<8x128xf32>
        %39 = arith.subf %38, %37 : vector<8x128xf32>
        %cst_21 = arith.constant 0.000000e+00 : f32
        %40 = vector.broadcast %cst_21 : f32 to vector<8x128xf32>
        %41 = arith.maximumf %39, %40 : vector<8x128xf32>
        %42 = math.sqrt %41 : vector<8x128xf32>
        %cst_22 = arith.constant 0.87758255 : f32
        %43 = vector.broadcast %cst_22 : f32 to vector<8x128xf32>
        %44 = arith.mulf %19, %43 : vector<8x128xf32>
        %cst_23 = arith.constant 0.47942555 : f32
        %45 = vector.broadcast %cst_23 : f32 to vector<8x128xf32>
        %46 = arith.mulf %42, %45 : vector<8x128xf32>
        %47 = arith.subf %44, %46 : vector<8x128xf32>
        %48 = arith.select %36, %47, %19 : vector<8x128xi1>, vector<8x128xf32>
        %cst_24 = arith.constant 2.000000e+01 : f32
        %49 = vector.broadcast %cst_24 : f32 to vector<8x128xf32>
        %50 = arith.mulf %48, %49 : vector<8x128xf32>
        %c0_25 = arith.constant 0 : index
        %c0_26 = arith.constant 0 : index
        %51 = vector.load %arg8[%c0_25, %c0_26] : memref<8x128xf32, #tpu.memory_space<vmem>>, vector<8x128xf32>
        tpu.vector_store %arg8[%c0_25, %c0_26], %50 {strides = array<i32>} : memref<8x128xf32, #tpu.memory_space<vmem>>, vector<8x128xf32>,
      } else {
      }
    } else {
    }
    return
  }
  func.func @transform_0(%arg0: i32, %arg1: i32, %arg2: i32, %arg3: memref<4xi32, #tpu.memory_space<smem>>) -> (i32, i32) {
    %c0_i32 = arith.constant 0 : i32
    return %arg1, %arg2 : i32, i32
  }
  func.func @transform_1(%arg0: i32, %arg1: i32, %arg2: i32, %arg3: memref<4xi32, #tpu.memory_space<smem>>) -> (i32, i32) {
    %c0_i32 = arith.constant 0 : i32
    return %arg2, %arg0 : i32, i32
  }
  func.func @transform_2(%arg0: i32, %arg1: i32, %arg2: i32, %arg3: memref<4xi32, #tpu.memory_space<smem>>) -> (i32, i32) {
    %c0_i32 = arith.constant 0 : i32
    %c0_i32_0 = arith.constant 0 : i32
    return %c0_i32, %arg0 : i32, i32
  }
  func.func @transform_3(%arg0: i32, %arg1: i32, %arg2: i32, %arg3: memref<4xi32, #tpu.memory_space<smem>>) -> (i32, i32) {
    %c0_i32 = arith.constant 0 : i32
    %c0_i32_0 = arith.constant 0 : i32
    return %arg1, %c0_i32 : i32, i32
  }
  func.func @transform_4(%arg0: i32, %arg1: i32, %arg2: i32, %arg3: memref<4xi32, #tpu.memory_space<smem>>) -> (i32, i32) {
    %c0_i32 = arith.constant 0 : i32
    return %arg1, %arg0 : i32, i32
  }
}

</mosaic_0001>

<llo_original>
// kernel: tpu_custom_call.1
$region0: #{tpu_custom_call.1}
  #allocation0 [shape = 'u32[]', space=smem, size = 0x4, offset = 0x4, fixed_abs, tag = 'smem constant byte address 0x4 - core index']
  #allocation1 [shape = 'u32[144,128]{1,0:T(1,128)}', space=vmem, size = 0x12000, scoped, tag = 'internal scratch']
  #allocation2 [shape = 'f32[8,128]{1,0:T(8,128)}', space=vmem, size = 0x1000, scoped, tag = 'scratch operand']
  #allocation3 [shape = 's32[1]{0}', space=sflag, size = 0x4, scoped, tag = 'scoped memory for tpu_custom_call.1']
  #allocation4 [shape = 'u8[512]{0}', space=smem, size = 0x200, scoped, tag = 'prefetched SMEM operand 0']
  %s0 = inlined_call_operand.vmem [shape: s32[4], index: 0, kind: input, shape index: {}]
  %s1 = inlined_call_operand.vmem [shape: bf16[16,256], index: 1, kind: input, shape index: {}]
  %s2 = inlined_call_operand.hbm [shape: bf16[256,256], index: 2, kind: input, shape index: {}]
  %s3 = inlined_call_operand.vmem [shape: f32[1,256], index: 3, kind: input, shape index: {}]
  %s4 = inlined_call_operand.vmem [shape: s32[16,1], index: 4, kind: input, shape index: {}]
  %s5 = inlined_call_operand.hbm [shape: f32[16,256], index: 5, kind: output, shape index: {}]
  %s6 = sld [smem:[#allocation0]]
  $region69: #{tpu_custom_call.1} parent=0
    _
  %s8 = ssub.s32 1, %s6
  %s9 = scalar_select 0, %s8, %s6
  %s10 = sshll.u32 %s0, 4
  %s11 = int_to_ptr.vmem [resolvable:$true] %s10
  %13 = dma.vmem_to_smem %s11, 16, [#allocation4], [#allocation3]
  %14 = dma.done [#allocation3], 16
  %15 = sfence
  $region1: #{tpu_custom_call.1} parent=0
    #allocation5 [shape = 'u8[65536]{0}', space=vmem, size = 0x10000, scoped, tag = 'input window, operand 2']
    #allocation6 [shape = 's32[2]{0}', space=sflag, size = 0x8, scoped, tag = 'scoped memory for tpu_custom_call.1']
    #allocation7 [shape = 's32[2]{0}', space=sflag, size = 0x8, scoped, tag = 'scoped memory for tpu_custom_call.1']
    #allocation8 [shape = 'u8[8192]{0}', space=vmem, size = 0x2000, scoped, tag = 'output window, operand 0']
    %16 = vsyncpa [#allocation6], 0
    %s17 = scalar_lea.sflag [#allocation6], 1
    %18 = vsyncpa %s17, 0
    %19 = vsyncpa [#allocation7], 0
    %s20 = scalar_lea.sflag [#allocation7], 1
    %21 = vsyncpa %s20, 0
    loop: start=0, step=1, limit=10
    $region2: #{tpu_custom_call.1} parent=1 // loop_pre_header
      _
    $region3: #{tpu_custom_call.1} parent=1 // loop_header
      %s23 = sphi 0, %s27
      %p24 = scmp.ge.s32.totalorder %s23, 10
      %s30 = sphi 0, %s49
      %s31 = sphi 0, %s45
      %s32 = sphi 0, %s41
      %s33 = sphi 0, %s30
      %s34 = sphi 0, %s31
      %s35 = sphi 0, %s32
      %s36 = sphi 0, %s33
      %s37 = sphi 0, %s34
      %s38 = sphi 0, %s35
      %s54 = sphi 0, %s56
      %s57 = sphi 0, %s54
      %s58 = sphi 0, %s57
      %s74 = sphi 0, %s58
      %s82 = sphi 0, %s84
      %s85 = sphi 0, %s82
      %s86 = sphi 0, %s85
      %s102 = sphi 0, %s86
      %s108 = sphi 0, %s110
      %s111 = sphi 0, %s108
      %s112 = sphi 0, %s111
      %s128 = sphi 0, %s112
      %s134 = sphi 0, %s136
      %s137 = sphi 0, %s134
      %s138 = sphi 0, %s137
      %s154 = sphi 0, %s138
      %s162 = sphi 0, %s164
      %s165 = sphi 0, %s162
      %s166 = sphi 0, %s165
      %s182 = sphi 0, %s166
    $region4: #{tpu_custom_call.1} parent=1 // loop_header_branch
      %26 = sbr.rel (%p24) target = $region8
    $region5: #{tpu_custom_call.1} parent=1 // loop_body
      %s28 = ssub.s32 %s23, 1
      %s29 = ssub.s32 %s23, 2
      %s39 = sadd.s32 1, %s32
      %p40 = scmp.ge.s32.totalorder %s39, 2
      %s41 = scalar_select %p40, 0, %s39
      %s42 = sadd.s32 1, %s31
      %s43 = scalar_select %p40, %s42, %s31
      %p44 = scmp.ge.s32.totalorder %s43, 2
      %s45 = scalar_select %p44, 0, %s43
      %s46 = sadd.s32 1, %s30
      %s47 = scalar_select %p44, %s46, %s30
      %p48 = scmp.ge.s32.totalorder %s47, 2
      %s49 = scalar_select %p48, 0, %s47
      %s50 = ssub.s32 %s31, %s45
      %s51 = ssub.s32 %s32, %s41
      %s52 = sor.u32 %s50, %s51
      %p53 = scmp.eq.s32.totalorder %s52, 0
      %s55 = sadd.s32 %s54, 1
      %s56 = scalar_select %p53, %s54, %s55
      %p59 = pneg %p53
      %p60 = scmp.eq.s32.totalorder %s23, 7
      %p61 = por %p59, %p60
      %p62 = scmp.ne.s32.totalorder %s54, %s57
      %p63 = scmp.eq.s32.totalorder %s23, 0
      %p64 = por %p62, %p63
      %p65 = scmp.ne.s32.totalorder %s54, %s57
      %p66 = scmp.eq.s32.totalorder %s28, 7
      %p67 = por %p65, %p66
      %p68 = scmp.ne.s32.totalorder %s57, %s58
      %p69 = scmp.eq.s32.totalorder %s28, 0
      %p70 = por %p68, %p69
      %p71 = scmp.ne.s32.totalorder %s57, %s58
      %p72 = scmp.eq.s32.totalorder %s29, 7
      %p73 = por %p71, %p72
      %p75 = scmp.ne.s32.totalorder %s58, %s74
      %p76 = scmp.eq.s32.totalorder %s29, 0
      %p77 = por %p75, %p76
      %s78 = ssub.s32 %s32, %s41
      %s79 = ssub.s32 %s30, %s49
      %s80 = sor.u32 %s78, %s79
      %p81 = scmp.eq.s32.totalorder %s80, 0
      %s83 = sadd.s32 %s82, 1
      %s84 = scalar_select %p81, %s82, %s83
      %p87 = pneg %p81
      %p88 = scmp.eq.s32.totalorder %s23, 7
      %p89 = por %p87, %p88
      %p90 = scmp.ne.s32.totalorder %s82, %s85
      %p91 = scmp.eq.s32.totalorder %s23, 0
      %p92 = por %p90, %p91
      %p93 = scmp.ne.s32.totalorder %s82, %s85
      %p94 = scmp.eq.s32.totalorder %s28, 7
      %p95 = por %p93, %p94
      %p96 = scmp.ne.s32.totalorder %s85, %s86
      %p97 = scmp.eq.s32.totalorder %s28, 0
      %p98 = por %p96, %p97
      %p99 = scmp.ne.s32.totalorder %s85, %s86
      %p100 = scmp.eq.s32.totalorder %s29, 7
      %p101 = por %p99, %p100
      %p103 = scmp.ne.s32.totalorder %s86, %s102
      %p104 = scmp.eq.s32.totalorder %s29, 0
      %p105 = por %p103, %p104
      %s106 = ssub.s32 %s30, %s49
      %p107 = scmp.eq.s32.totalorder %s106, 0
      %s109 = sadd.s32 %s108, 1
      %s110 = scalar_select %p107, %s108, %s109
      %p113 = pneg %p107
      %p114 = scmp.eq.s32.totalorder %s23, 7
      %p115 = por %p113, %p114
      %p116 = scmp.ne.s32.totalorder %s108, %s111
      %p117 = scmp.eq.s32.totalorder %s23, 0
      %p118 = por %p116, %p117
      %p119 = scmp.ne.s32.totalorder %s108, %s111
      %p120 = scmp.eq.s32.totalorder %s28, 7
      %p121 = por %p119, %p120
      %p122 = scmp.ne.s32.totalorder %s111, %s112
      %p123 = scmp.eq.s32.totalorder %s28, 0
      %p124 = por %p122, %p123
      %p125 = scmp.ne.s32.totalorder %s111, %s112
      %p126 = scmp.eq.s32.totalorder %s29, 7
      %p127 = por %p125, %p126
      %p129 = scmp.ne.s32.totalorder %s112, %s128
      %p130 = scmp.eq.s32.totalorder %s29, 0
      %p131 = por %p129, %p130
      %s132 = ssub.s32 %s31, %s45
      %p133 = scmp.eq.s32.totalorder %s132, 0
      %s135 = sadd.s32 %s134, 1
      %s136 = scalar_select %p133, %s134, %s135
      %p139 = pneg %p133
      %p140 = scmp.eq.s32.totalorder %s23, 7
      %p141 = por %p139, %p140
      %p142 = scmp.ne.s32.totalorder %s134, %s137
      %p143 = scmp.eq.s32.totalorder %s23, 0
      %p144 = por %p142, %p143
      %p145 = scmp.ne.s32.totalorder %s134, %s137
      %p146 = scmp.eq.s32.totalorder %s28, 7
      %p147 = por %p145, %p146
      %p148 = scmp.ne.s32.totalorder %s137, %s138
      %p149 = scmp.eq.s32.totalorder %s28, 0
      %p150 = por %p148, %p149
      %p151 = scmp.ne.s32.totalorder %s137, %s138
      %p152 = scmp.eq.s32.totalorder %s29, 7
      %p153 = por %p151, %p152
      %p155 = scmp.ne.s32.totalorder %s138, %s154
      %p156 = scmp.eq.s32.totalorder %s29, 0
      %p157 = por %p155, %p156
      %s158 = ssub.s32 %s31, %s45
      %s159 = ssub.s32 %s30, %s49
      %s160 = sor.u32 %s158, %s159
      %p161 = scmp.eq.s32.totalorder %s160, 0
      %s163 = sadd.s32 %s162, 1
      %s164 = scalar_select %p161, %s162, %s163
      %p167 = pneg %p161
      %p168 = scmp.eq.s32.totalorder %s23, 7
      %p169 = por %p167, %p168
      %p170 = scmp.ne.s32.totalorder %s162, %s165
      %p171 = scmp.eq.s32.totalorder %s23, 0
      %p172 = por %p170, %p171
      %p173 = scmp.ne.s32.totalorder %s162, %s165
      %p174 = scmp.eq.s32.totalorder %s28, 7
      %p175 = por %p173, %p174
      %p176 = scmp.ne.s32.totalorder %s165, %s166
      %p177 = scmp.eq.s32.totalorder %s28, 0
      %p178 = por %p176, %p177
      %p179 = scmp.ne.s32.totalorder %s165, %s166
      %p180 = scmp.eq.s32.totalorder %s29, 7
      %p181 = por %p179, %p180
      %p183 = scmp.ne.s32.totalorder %s166, %s182
      %p184 = scmp.eq.s32.totalorder %s29, 0
      %p185 = por %p183, %p184
      %p186 = scmp.le.s32.totalorder 1, %s23
      %p187 = scmp.lt.s32.totalorder %s23, 9
      %p188 = pnand %p186, %p187
      %p189 = pneg %p188
      // Predicated region
      $region9: #{tpu_custom_call.1} parent=5 // pred_check
        _
      $region10: #{tpu_custom_call.1} parent=5 // pred_check_branch
        %191 = sbr.rel (%p188) target = $region12
      $region11: #{tpu_custom_call.1} parent=5 // pred_region
        %s192 = ssub.s32 %s23, 1
      $region12: #{tpu_custom_call.1} parent=5 // pred_fallthru
        _
      %p193 = scmp.lt.s32.totalorder %s23, 8
      // Predicated region
      $region13: #{tpu_custom_call.1} parent=5 // pred_check
        %p194 = pneg %p193
      $region14: #{tpu_custom_call.1} parent=5 // pred_check_branch
        %196 = sbr.rel (%p194) target = $region16
      $region15: #{tpu_custom_call.1} parent=5 // pred_region
        // Predicated region
        $region17: #{tpu_custom_call.1} parent=15 // pred_check
          %p197 = pneg %p64
        $region18: #{tpu_custom_call.1} parent=15 // pred_check_branch
          %199 = sbr.rel (%p197) target = $region20
        $region19: #{tpu_custom_call.1} parent=15 // pred_region
          %p200 = scmp.lt.s32.totalorder %s31, 1
          %s201 = scalar_select %p200, %s31, 1
          %p202 = scmp.lt.s32.totalorder %s32, 1
          %s203 = scalar_select %p202, %s32, 1
          %s204 = smul.addr %s201, 2
          %s205 = sadd.s32 %s203, %s204
          %s206 = smul.addr %s205, 4
          %s207 = scalar_lea.vmem %s1, %s206
        $region20: #{tpu_custom_call.1} parent=15 // pred_fallthru
          _
        // Predicated region
        $region21: #{tpu_custom_call.1} parent=15 // pred_check
          %p208 = pneg %p92
        $region22: #{tpu_custom_call.1} parent=15 // pred_check_branch
          %210 = sbr.rel (%p208) target = $region24
        $region23: #{tpu_custom_call.1} parent=15 // pred_region
          %s211 = sand.u32 %s82, 1
          %s212 = scalar_lea.sflag [#allocation6], %s211
          %s213 = sand.u32 %s82, 1
          %s214 = smul.addr %s213, 64
          %s215 = scalar_lea.vmem [#allocation5], %s214
          %s216 = smul.u32 16, %s32
          %s218 = ssub.s32 1024, 1024
          %219 = vsyncadd %s212, %s218
          %s220 = smul.addr %s216, 2
          %s221 = sadd.s32 %s30, %s220
          %s222 = smul.addr %s221, 64
          %s223 = scalar_lea.hbm %s2, %s222
          %s224 = sshll.u32 %s215, 4
          %s225 = int_to_ptr.vmem [resolvable:$true] %s224
          %230 = dma.hbm_to_vmem [thread:$0]  %s223, 1024, %s225, %s212, 128, 64, 4
        $region24: #{tpu_custom_call.1} parent=15 // pred_fallthru
          _
        // Predicated region
        $region25: #{tpu_custom_call.1} parent=15 // pred_check
          %p231 = pneg %p118
        $region26: #{tpu_custom_call.1} parent=15 // pred_check_branch
          %233 = sbr.rel (%p231) target = $region28
        $region27: #{tpu_custom_call.1} parent=15 // pred_region
          %p234 = scmp.lt.s32.totalorder %s30, 1
          %s235 = scalar_select %p234, %s30, 1
          %s236 = scalar_lea.vmem %s3, %s235
        $region28: #{tpu_custom_call.1} parent=15 // pred_fallthru
          _
        // Predicated region
        $region29: #{tpu_custom_call.1} parent=15 // pred_check
          %p237 = pneg %p144
        $region30: #{tpu_custom_call.1} parent=15 // pred_check_branch
          %239 = sbr.rel (%p237) target = $region32
        $region31: #{tpu_custom_call.1} parent=15 // pred_region
          %p240 = scmp.lt.s32.totalorder %s31, 1
          %s241 = scalar_select %p240, %s31, 1
          %s242 = smul.addr %s241, 8
          %s243 = scalar_lea.vmem %s4, %s242
        $region32: #{tpu_custom_call.1} parent=15 // pred_fallthru
          _
      $region16: #{tpu_custom_call.1} parent=5 // pred_fallthru
        _
      %p244 = scmp.le.s32.totalorder 1, %s23
      %p245 = scmp.lt.s32.totalorder %s23, 9
      %p246 = pnand %p244, %p245
      %p247 = pneg %p246
      // Predicated region
      $region33: #{tpu_custom_call.1} parent=5 // pred_check
        _
      $region34: #{tpu_custom_call.1} parent=5 // pred_check_branch
        %249 = sbr.rel (%p246) target = $region36
      $region35: #{tpu_custom_call.1} parent=5 // pred_region
        %s250 = ssub.s32 %s23, 1
        %s251 = sand.u32 %s85, 1
        %s252 = scalar_lea.sflag [#allocation6], %s251
        %s253 = sand.u32 %s85, 1
        %s254 = smul.addr %s253, 64
        %s255 = scalar_lea.vmem [#allocation5], %s254
        // Predicated region
        $region37: #{tpu_custom_call.1} parent=35 // pred_check
          %p256 = pneg %p98
        $region38: #{tpu_custom_call.1} parent=35 // pred_check_branch
          %258 = sbr.rel (%p256) target = $region40
        $region39: #{tpu_custom_call.1} parent=35 // pred_region
          %259 = dma.done %s252, 1024
        $region40: #{tpu_custom_call.1} parent=35 // pred_fallthru
          _
        %p260 = scmp.lt.s32.totalorder %s34, 1
        %s261 = scalar_select %p260, %s34, 1
        %p262 = scmp.lt.s32.totalorder %s35, 1
        %s263 = scalar_select %p262, %s35, 1
        %s264 = smul.addr %s261, 2
        %s265 = sadd.s32 %s263, %s264
        %s266 = smul.addr %s265, 4
        %s267 = scalar_lea.vmem %s1, %s266
        %p268 = pneg %p70
        %p269 = pneg %p67
        %s270 = sand.u32 %s85, 1
        %s271 = scalar_lea.sflag [#allocation6], %s270
        %s272 = sand.u32 %s85, 1
        %s273 = smul.addr %s272, 64
        %s274 = scalar_lea.vmem [#allocation5], %s273
        %p275 = pneg %p98
        %p276 = pneg %p95
        %p277 = scmp.lt.s32.totalorder %s33, 1
        %s278 = scalar_select %p277, %s33, 1
        %s279 = scalar_lea.vmem %s3, %s278
        %p280 = pneg %p124
        %p281 = pneg %p121
        %p282 = scmp.lt.s32.totalorder %s34, 1
        %s283 = scalar_select %p282, %s34, 1
        %s284 = smul.addr %s283, 8
        %s285 = scalar_lea.vmem %s4, %s284
        %p286 = pneg %p150
        %p287 = pneg %p147
        %p288 = pneg %p178
        %p289 = pneg %p175
        %s290 = sand.u32 %s165, 1
        %s291 = scalar_lea.sflag [#allocation7], %s290
        %s292 = sand.u32 %s165, 1
        %s293 = smul.addr %s292, 8
        %s294 = scalar_lea.vmem [#allocation8], %s293
        %p295 = scmp.lt.s32.totalorder %s34, 1
        %s296 = scalar_select %p295, %s34, 1
        %p297 = scmp.lt.s32.totalorder %s35, 1
        %s298 = scalar_select %p297, %s35, 1
        %s299 = smul.addr %s296, 2
        %s300 = sadd.s32 %s298, %s299
        %s301 = smul.addr %s300, 4
        %s302 = scalar_lea.vmem %s1, %s301
        %s303 = smul.u32 16, %s35
        %p304 = scmp.lt.s32.totalorder %s33, 1
        %s305 = scalar_select %p304, %s33, 1
        %s306 = scalar_lea.vmem %s3, %s305
        %p307 = scmp.lt.s32.totalorder %s34, 1
        %s308 = scalar_select %p307, %s34, 1
        %s309 = smul.addr %s308, 8
        %s310 = scalar_lea.vmem %s4, %s309
        %p312 = scmp.eq.s32.totalorder %s35, 0
        // Predicated region
        $region41: #{tpu_custom_call.1} parent=35 // pred_check
          %p313 = pneg %p312
        $region42: #{tpu_custom_call.1} parent=35 // pred_check_branch
          %315 = sbr.rel (%p313) target = $region44
        $region43: #{tpu_custom_call.1} parent=35 // pred_region
          %316 = vst [vmem:[#allocation2] sm:$0xff] 0.0
        $region44: #{tpu_custom_call.1} parent=35 // pred_fallthru
          _
        %v317 = vld [vmem:[#allocation2] sm:$0xff]
        %v318 = vld [vmem:[%s302] sm:$0xf]
        %v319 = vld [vmem:[%s255] sm:$0xf]
        %v320 = vld [vmem:[%s255 + $0x4] sm:$0xf]
        %v321 = vld [vmem:[%s255 + $0x8] sm:$0xf]
        %v322 = vld [vmem:[%s255 + $0xc] sm:$0xf]
        %v323 = vld [vmem:[%s255 + $0x10] sm:$0xf]
        %v324 = vld [vmem:[%s255 + $0x14] sm:$0xf]
        %v325 = vld [vmem:[%s255 + $0x18] sm:$0xf]
        %v326 = vld [vmem:[%s255 + $0x1c] sm:$0xf]
        %v327 = vld [vmem:[%s255 + $0x20] sm:$0xf]
        %v328 = vld [vmem:[%s255 + $0x24] sm:$0xf]
        %v329 = vld [vmem:[%s255 + $0x28] sm:$0xf]
        %v330 = vld [vmem:[%s255 + $0x2c] sm:$0xf]
        %v331 = vld [vmem:[%s255 + $0x30] sm:$0xf]
        %v332 = vld [vmem:[%s255 + $0x34] sm:$0xf]
        %v333 = vld [vmem:[%s255 + $0x38] sm:$0xf]
        %v334 = vld [vmem:[%s255 + $0x3c] sm:$0xf]
        %v351 = vunpack.c.l.b16 %v319
        %v352 = vunpack.c.l.b16 %v320
        %v353 = vunpack.c.l.b16 %v321
        %v354 = vunpack.c.l.b16 %v322
        %v355 = vunpack.c.l.b16 %v323
        %v356 = vunpack.c.l.b16 %v324
        %v357 = vunpack.c.l.b16 %v325
        %v358 = vunpack.c.l.b16 %v326
        %v359 = vunpack.c.l.b16 %v327
        %v360 = vunpack.c.l.b16 %v328
        %v361 = vunpack.c.l.b16 %v329
        %v362 = vunpack.c.l.b16 %v330
        %v363 = vunpack.c.l.b16 %v331
        %v364 = vunpack.c.l.b16 %v332
        %v365 = vunpack.c.l.b16 %v333
        %v366 = vunpack.c.l.b16 %v334
        %v367 = vpack.c.b16 %v352, %v351
        %v368 = vpack.c.b16 %v354, %v353
        %v369 = vpack.c.b16 %v356, %v355
        %v370 = vpack.c.b16 %v358, %v357
        %v371 = vpack.c.b16 %v360, %v359
        %v372 = vpack.c.b16 %v362, %v361
        %v373 = vpack.c.b16 %v364, %v363
        %v374 = vpack.c.b16 %v366, %v365
        %383 = vmatprep.subr.bf16.mxu0 0
        %384 = vmatpush1.bf16.msra.mxu0 %v367
        %385 = vmatprep.subr.bf16.mxu0 0
        %386 = vmatpush1.bf16.msra.mxu0 %v368
        %387 = vmatprep.subr.bf16.mxu0 0
        %388 = vmatpush1.bf16.msra.mxu0 %v369
        %389 = vmatprep.subr.bf16.mxu0 0
        %390 = vmatpush1.bf16.msra.mxu0 %v370
        %391 = vmatprep.subr.bf16.mxu0 0
        %392 = vmatpush1.bf16.msra.mxu0 %v371
        %393 = vmatprep.subr.bf16.mxu0 0
        %394 = vmatpush1.bf16.msra.mxu0 %v372
        %395 = vmatprep.subr.bf16.mxu0 0
        %396 = vmatpush1.bf16.msra.mxu0 %v373
        %397 = vmatprep.subr.bf16.mxu0 0
        %398 = vmatpush1.bf16.msra.mxu0 %v374
        %399 = vmatprep.subr.bf16.mxu0 0
        %400 = vmatpush1.bf16.msra.mxu0 0
        %401 = vmatprep.subr.bf16.mxu0 0
        %402 = vmatpush1.bf16.msra.mxu0 0
        %403 = vmatprep.subr.bf16.mxu0 0
        %404 = vmatpush1.bf16.msra.mxu0 0
        %405 = vmatprep.subr.bf16.mxu0 0
        %406 = vmatpush1.bf16.msra.mxu0 0
        %407 = vmatprep.subr.bf16.mxu0 0
        %408 = vmatpush1.bf16.msra.mxu0 0
        %409 = vmatprep.subr.bf16.mxu0 0
        %410 = vmatpush1.bf16.msra.mxu0 0
        %411 = vmatprep.subr.bf16.mxu0 0
        %412 = vmatpush1.bf16.msra.mxu0 0
        %413 = vmatprep.subr.bf16.mxu0 0
        %414 = vmatpush1.bf16.msra.mxu0 0
        %415 = vmatprep.mubr.bf16.mxu0 0
        %416 = vmatmul.mubr.bf16.gmra.mrb[0].mxu0 %v318
        %v417 = vpop.f32.mrb[0].mxu0
        %v418 = vadd.f32 0.0, %v417
        %v419 = vpop.f32.mrb[0].mxu0
        %v420 = vpop.f32.mrb[0].mxu0
        %v421 = vpop.f32.mrb[0].mxu0
        %422 = vdwg.mxu0
        %v423 = vadd.f32 %v317, %v418
        %424 = vst [vmem:[#allocation2] sm:$0xff] %v423
        %p425 = scmp.eq.s32.totalorder %s35, 1
        // Predicated region
        $region45: #{tpu_custom_call.1} parent=35 // pred_check
          %p426 = pneg %p425
        $region46: #{tpu_custom_call.1} parent=35 // pred_check_branch
          %428 = sbr.rel (%p426) target = $region48
        $region47: #{tpu_custom_call.1} parent=35 // pred_region
          %v429 = vld [vmem:[#allocation2] sm:$0xff]
          %v430 = vld [vmem:[%s306] sm:$0x1]
          %v432 = vlaneseq
          %v433 = vshrl.u32 %v432, 7
          %v434 = vsub.s32 0, %v433
          %v435 = vrot.slane %v430, %v434
          %v437 = vmul.f32 %v429, %v435
          %v438 = vmax.f32 %v437, -1.0
          %v439 = vmin.f32 %v438, 1.0
          %s440 = smul.u32 %s34, 2
          %s441 = sadd.s32 %s440, %s33
          %s442 = sld [smem:[#allocation4 + %s441]]
          %p443 = scmp.ne.s32.totalorder %s442, 0
          %p444 = scmp.eq.s32.totalorder %s442, 0
          // Predicated region
          $region49: #{tpu_custom_call.1} parent=47 // pred_check
            %p445 = pneg %p444
          $region50: #{tpu_custom_call.1} parent=47 // pred_check_branch
            %447 = sbr.rel (%p445) target = $region52
          $region51: #{tpu_custom_call.1} parent=47 // pred_region
            %v448 = vmul.f32 %v439, 20.0
            %449 = vst [vmem:[%s294] sm:$0xff] %v448
          $region52: #{tpu_custom_call.1} parent=47 // pred_fallthru
            _
          // Predicated region
          $region53: #{tpu_custom_call.1} parent=47 // pred_check
            %p450 = pneg %p443
          $region54: #{tpu_custom_call.1} parent=47 // pred_check_branch
            %452 = sbr.rel (%p450) target = $region56
          $region55: #{tpu_custom_call.1} parent=47 // pred_region
            %s453 = smul.u32 %s33, 128
            %v454 = vlaneseq
            %v455 = vand.u32 %v454, 127
            %v456 = vstv %s453
            %v457 = vadd.s32 %v456, %v455
            %v458 = vld [vmem:[%s310] sm:$0xff]
            %459 = vset.pattern.permute.xlu0 0
            %460 = vperm.xlu0 %459, %v458
            %v461 = vpop.permute.xlu0 %460
            %vm462 = vcmp.eq.s32.totalorder %v461, %v457
            %v463 = vmul.f32 %v439, %v439
            %v464 = vsub.f32 1.0, %v463
            %v465 = vmax.f32 %v464, 0.0
            %v466 = vrsqrt.pop %v465
            %v467 = vmul.f32 %v465, %v466
            %vm468 = vcmp.eq.f32.partialorder %v465, inf
            %v469 = vsel %vm468, %v465, %v467
            %vm470 = vcmp.eq.f32.partialorder %v465, 0.0
            %v471 = vand.u32 %v465, 2147483648
            %v472 = vsel %vm470, %v471, %v469
            %v473 = vmul.f32 %v439, 0.87758255
            %v474 = vmul.f32 %v472, 0.47942555
            %v475 = vsub.f32 %v473, %v474
            %v476 = vsel %vm462, %v475, %v439
            %v477 = vmul.f32 %v476, 20.0
            %478 = vst [vmem:[%s294] sm:$0xff] %v477
          $region56: #{tpu_custom_call.1} parent=47 // pred_fallthru
            _
        $region48: #{tpu_custom_call.1} parent=35 // pred_fallthru
          _
        %s479 = sand.u32 %s165, 1
        %s480 = scalar_lea.sflag [#allocation7], %s479
        %s481 = sand.u32 %s165, 1
        %s482 = smul.addr %s481, 8
        %s483 = scalar_lea.vmem [#allocation8], %s482
        // Predicated region
        $region57: #{tpu_custom_call.1} parent=35 // pred_check
          %p484 = pneg %p175
        $region58: #{tpu_custom_call.1} parent=35 // pred_check_branch
          %486 = sbr.rel (%p484) target = $region60
        $region59: #{tpu_custom_call.1} parent=35 // pred_region
          %s488 = ssub.s32 128, 128
          %489 = vsyncadd %s480, %s488
          %s490 = smul.addr %s34, 2
          %s491 = sadd.s32 %s33, %s490
          %s492 = smul.addr %s491, 128
          %s493 = scalar_lea.hbm %s5, %s492
          %s495 = sshll.u32 %s483, 4
          %s496 = int_to_ptr.vmem [resolvable:$true] %s495
          %498 = dma.vmem_to_hbm [thread:$0]  %s496, 128, %s493, %s480
        $region60: #{tpu_custom_call.1} parent=35 // pred_fallthru
          _
      $region36: #{tpu_custom_call.1} parent=5 // pred_fallthru
        _
      %p499 = scmp.le.s32.totalorder 2, %s23
      // Predicated region
      $region61: #{tpu_custom_call.1} parent=5 // pred_check
        %p500 = pneg %p499
      $region62: #{tpu_custom_call.1} parent=5 // pred_check_branch
        %502 = sbr.rel (%p500) target = $region64
      $region63: #{tpu_custom_call.1} parent=5 // pred_region
        %s503 = ssub.s32 %s23, 2
        // Predicated region
        $region65: #{tpu_custom_call.1} parent=63 // pred_check
          %p504 = pneg %p181
        $region66: #{tpu_custom_call.1} parent=63 // pred_check_branch
          %506 = sbr.rel (%p504) target = $region68
        $region67: #{tpu_custom_call.1} parent=63 // pred_region
          %s507 = sand.u32 %s166, 1
          %s508 = scalar_lea.sflag [#allocation7], %s507
          %s509 = sand.u32 %s166, 1
          %s510 = smul.addr %s509, 8
          %s511 = scalar_lea.vmem [#allocation8], %s510
          %512 = dma.done %s508, 128
        $region68: #{tpu_custom_call.1} parent=63 // pred_fallthru
          _
      $region64: #{tpu_custom_call.1} parent=5 // pred_fallthru
        _
    $region6: #{tpu_custom_call.1} parent=1 // loop_footer
      %s27 = sadd.s32 1, %s23
    $region7: #{tpu_custom_call.1} parent=1 // loop_footer_branch
      %22 = sbr.rel target = $region3
    $region8: #{tpu_custom_call.1} parent=1 // loop_exit
      _
    %513 = vsyncpa [#allocation6], 1
    %s514 = scalar_lea.sflag [#allocation6], 1
    %515 = vsyncpa %s514, 1
    %516 = vsyncpa [#allocation7], 1
    %s517 = scalar_lea.sflag [#allocation7], 1
    %518 = vsyncpa %s517, 1

</llo_original>
